<compile_context>
chip_gen: v7x
topology: tpu7x:2x2x1
jax: 0.10.0
libtpu: 0.0.40
codegen_flags: <defaults>
</compile_context>

<pallas_src>
import functools
import math

import jax
import jax.numpy as jnp
from jax.experimental import pallas as pl
from jax.experimental.pallas import tpu as pltpu

_LANE = 128
_SUBLANE = 8
_MAX_TILE = 1024                      # largest batch tile per grid step
_NEG_BIG = jnp.float32(-1e30)         # "-inf" stand-in for padded logit lanes


def _round_up(n, m):
    return ((n + m - 1) // m) * m


def _choose_batch_tile(batch):
    """Largest tile <= _MAX_TILE, with >= 2 grid steps for non-tiny batches
    (v7x dual-TC sharding via dimension_semantics=('parallel',))."""
    if batch <= 2 * _SUBLANE:
        return _round_up(batch, _SUBLANE)          # single tile
    half = _round_up(-(-batch // 2), 16)           # ceil(batch/2), 16-aligned
    return min(half, _MAX_TILE)


def _make_fused_mlp_kernel(num_layers):
    """Fused [Linear -> ReLU]*(L-1) -> Linear -> log_softmax kernel body."""

    def kernel(*refs):
        # refs = (x_ref, w0, b0, w1, b1, ..., w_{L-1}, b_{L-1}, o_ref)
        x_ref = refs[0]
        o_ref = refs[-1]
        h = x_ref[...]                              # bf16 (tb, in_features)
        for l in range(num_layers):
            w = refs[1 + 2 * l][...]                # bf16 weights
            b = refs[2 + 2 * l][...]                # f32 (1, out_pad) bias
            y = jnp.dot(h, w, preferred_element_type=jnp.float32) + b
            if l < num_layers - 1:
                # TODO(synk): training-mode dropout not implemented
                # (nn.Dropout is the identity in eval mode).
                h = jnp.maximum(y, 0.0).astype(jnp.bfloat16)
            else:
                # log_softmax over the padded lane axis in f32; padded lanes
                # carry a -1e30 bias so they contribute exp(.) == 0.
                m = jnp.max(y, axis=-1, keepdims=True)
                shifted = y - m
                lse = jnp.log(jnp.sum(jnp.exp(shifted), axis=-1, keepdims=True))
                o_ref[...] = (shifted - lse).astype(o_ref.dtype)

    return kernel


def init_params(key, input_size, output_size, hidden_layers):
    """PyTorch-Linear-style init; weights stored (in, out), biases (out,)."""
    sizes = [input_size] + list(hidden_layers) + [output_size]
    params = []
    for fan_in, fan_out in zip(sizes[:-1], sizes[1:]):
        key, kw, kb = jax.random.split(key, 3)
        bound = 1.0 / math.sqrt(fan_in)
        w = jax.random.uniform(kw, (fan_in, fan_out), jnp.float32, -bound, bound)
        b = jax.random.uniform(kb, (fan_out,), jnp.float32, -bound, bound)
        params.append((w, b))
    return params


def pad_params(params):
    """bf16 weights, f32 biases; lane-pad N to 128.  K is padded only for
    layers > 0 (to match the previous layer's padded output); layer 0 keeps
    the raw input-feature K so x needs no feature padding.  Final-layer padded
    bias lanes are -1e30 so padded logits vanish in log_softmax."""
    padded = []
    n = len(params)
    for l, (w, b) in enumerate(params):
        fin, fout = w.shape
        fin_p = fin if l == 0 else _round_up(fin, _LANE)
        fout_p = _round_up(fout, _LANE)
        w_p = jnp.zeros((fin_p, fout_p), jnp.bfloat16)
        w_p = w_p.at[:fin, :fout].set(w.astype(jnp.bfloat16))
        fill = _NEG_BIG if l == n - 1 else jnp.float32(0.0)
        b_p = jnp.full((1, fout_p), fill, jnp.float32).at[0, :fout].set(b)
        padded.append((w_p, b_p))
    return tuple(padded)


@functools.partial(jax.jit, static_argnames=("output_size",))
def my_awesome_model_forward(x, padded_params, output_size):
    batch, in_features = x.shape
    num_layers = len(padded_params)
    out_pad = padded_params[-1][0].shape[1]

    tb = _choose_batch_tile(batch)
    batch_pad = _round_up(batch, tb)
    grid = (batch_pad // tb,)

    # bf16 input; only the batch rows are zero-padded (feature dim unpadded).
    x_p = jnp.zeros((batch_pad, in_features), jnp.bfloat16)
    x_p = x_p.at[:batch, :].set(x.astype(jnp.bfloat16))

    in_specs = [pl.BlockSpec((tb, in_features), lambda i: (i, 0))]
    flat_params = []
    for w, b in padded_params:
        # Constant index_map -> each weight/bias is fetched to VMEM once.
        in_specs.append(pl.BlockSpec(w.shape, lambda i: (0, 0)))
        in_specs.append(pl.BlockSpec(b.shape, lambda i: (0, 0)))
        flat_params.extend((w, b))
    out_specs = pl.BlockSpec((tb, out_pad), lambda i: (i, 0))

    flops = 2 * batch_pad * sum(int(w.shape[0]) * int(w.shape[1])
                                for w, _ in padded_params)
    bytes_accessed = (2 * x_p.size + 4 * batch_pad * out_pad
                      + sum(2 * w.size + 4 * b.size for w, b in padded_params))
    cost = pl.CostEstimate(flops=int(flops),
                           transcendentals=int(2 * batch_pad * out_pad),
                           bytes_accessed=int(bytes_accessed))

    out_p = pl.pallas_call(
        _make_fused_mlp_kernel(num_layers),
        out_shape=jax.ShapeDtypeStruct((batch_pad, out_pad), jnp.float32),
        grid=grid,
        in_specs=in_specs,
        out_specs=out_specs,
        compiler_params=pltpu.CompilerParams(dimension_semantics=("parallel",)),
        cost_estimate=cost,
    )(x_p, *flat_params)

    return out_p[:batch, :output_size]


def reference_forward(x, params):
    """Pure-JAX reference mirroring the kernel's math (bf16 weights/activations,
    f32 accumulation and f32 log_softmax)."""
    h = x.astype(jnp.bfloat16)
    *hidden, (w_out, b_out) = params
    for w, b in hidden:
        y = jnp.dot(h, w.astype(jnp.bfloat16),
                    preferred_element_type=jnp.float32) + b
        h = jnp.maximum(y, 0.0).astype(jnp.bfloat16)
    y = jnp.dot(h, w_out.astype(jnp.bfloat16),
                preferred_element_type=jnp.float32) + b_out
    return jax.nn.log_softmax(y, axis=1)


if __name__ == "__main__":
    input_size = 32
    output_size = 10
    hidden_layers = [64, 32]
    batch = 24   # -> tile of 16 rows, 2 grid steps (exercises padding + 2-step grid)

    key = jax.random.PRNGKey(0)
    key, kp, kx = jax.random.split(key, 3)
    params = init_params(kp, input_size, output_size, hidden_layers)
    padded = pad_params(params)

    x = jax.random.normal(kx, (batch, input_size), jnp.float32)

    out = my_awesome_model_forward(x, padded, output_size=output_size)
    out = jax.block_until_ready(out)

    ref = reference_forward(x, params)
    assert out.shape == (batch, output_size), out.shape
    assert jnp.allclose(out, ref, atol=2e-3, rtol=2e-3), "mismatch vs reference"

    print("KERNEL_OK")
</pallas_src>

<mosaic_0001>
module attributes {stable_mosaic.version = 11 : i64} {
  func.func @kernel(%arg0: i32, %arg1: memref<16x32xbf16, #tpu.memory_space<vmem>>, %arg2: memref<32x128xbf16, #tpu.memory_space<vmem>>, %arg3: memref<1x128xf32, #tpu.memory_space<vmem>>, %arg4: memref<128x128xbf16, #tpu.memory_space<vmem>>, %arg5: memref<1x128xf32, #tpu.memory_space<vmem>>, %arg6: memref<128x128xbf16, #tpu.memory_space<vmem>>, %arg7: memref<1x128xf32, #tpu.memory_space<vmem>>, %arg8: memref<16x128xf32, #tpu.memory_space<vmem>>) attributes {dimension_semantics = [#tpu.dimension_semantics<parallel>], iteration_bounds = array<i64: 2>, scalar_prefetch = 0 : i64, scratch_operands = 0 : i64, tpu.core_type = #tpu.core_type<tc>, window_params = [{transform_indices = @transform_0, window_bounds = array<i64: 16, 32>}, {pipeline_mode = #tpu.pipeline_mode<synchronous>, transform_indices = @transform_1, window_bounds = array<i64: 32, 128>}, {pipeline_mode = #tpu.pipeline_mode<synchronous>, transform_indices = @transform_2, window_bounds = array<i64: 1, 128>}, {pipeline_mode = #tpu.pipeline_mode<synchronous>, transform_indices = @transform_3, window_bounds = array<i64: 128, 128>}, {pipeline_mode = #tpu.pipeline_mode<synchronous>, transform_indices = @transform_4, window_bounds = array<i64: 1, 128>}, {pipeline_mode = #tpu.pipeline_mode<synchronous>, transform_indices = @transform_5, window_bounds = array<i64: 128, 128>}, {pipeline_mode = #tpu.pipeline_mode<synchronous>, transform_indices = @transform_6, window_bounds = array<i64: 1, 128>}, {transform_indices = @transform_7, window_bounds = array<i64: 16, 128>}]} {
    %c0 = arith.constant 0 : index
    %c0_0 = arith.constant 0 : index
    %0 = vector.load %arg1[%c0, %c0_0] : memref<16x32xbf16, #tpu.memory_space<vmem>>, vector<16x32xbf16>
    %c0_1 = arith.constant 0 : index
    %c0_2 = arith.constant 0 : index
    %1 = vector.load %arg2[%c0_1, %c0_2] : memref<32x128xbf16, #tpu.memory_space<vmem>>, vector<32x128xbf16>
    %c0_3 = arith.constant 0 : index
    %c0_4 = arith.constant 0 : index
    %2 = vector.load %arg3[%c0_3, %c0_4] : memref<1x128xf32, #tpu.memory_space<vmem>>, vector<1x128xf32>
    %cst = arith.constant dense<0.000000e+00> : vector<16x128xf32>
    %3 = tpu.matmul %0, %1, %cst {dimension_numbers = #tpu.dot_dimension_numbers<[1], [0], [0], [1], [0, 0, 1, 1], [], []>} : vector<16x32xbf16>, vector<32x128xbf16>, vector<16x128xf32> -> vector<16x128xf32>
    %4 = vector.broadcast %2 : vector<1x128xf32> to vector<16x128xf32>
    %5 = arith.addf %3, %4 : vector<16x128xf32>
    %cst_5 = arith.constant 0.000000e+00 : f32
    %6 = vector.broadcast %cst_5 : f32 to vector<16x128xf32>
    %7 = arith.maximumf %5, %6 : vector<16x128xf32>
    %8 = arith.truncf %7 : vector<16x128xf32> to vector<16x128xbf16>
    %c0_6 = arith.constant 0 : index
    %c0_7 = arith.constant 0 : index
    %9 = vector.load %arg4[%c0_6, %c0_7] : memref<128x128xbf16, #tpu.memory_space<vmem>>, vector<128x128xbf16>
    %c0_8 = arith.constant 0 : index
    %c0_9 = arith.constant 0 : index
    %10 = vector.load %arg5[%c0_8, %c0_9] : memref<1x128xf32, #tpu.memory_space<vmem>>, vector<1x128xf32>
    %cst_10 = arith.constant dense<0.000000e+00> : vector<16x128xf32>
    %11 = tpu.matmul %8, %9, %cst_10 {dimension_numbers = #tpu.dot_dimension_numbers<[1], [0], [0], [1], [0, 0, 1, 1], [], []>} : vector<16x128xbf16>, vector<128x128xbf16>, vector<16x128xf32> -> vector<16x128xf32>
    %12 = vector.broadcast %10 : vector<1x128xf32> to vector<16x128xf32>
    %13 = arith.addf %11, %12 : vector<16x128xf32>
    %cst_11 = arith.constant 0.000000e+00 : f32
    %14 = vector.broadcast %cst_11 : f32 to vector<16x128xf32>
    %15 = arith.maximumf %13, %14 : vector<16x128xf32>
    %16 = arith.truncf %15 : vector<16x128xf32> to vector<16x128xbf16>
    %c0_12 = arith.constant 0 : index
    %c0_13 = arith.constant 0 : index
    %17 = vector.load %arg6[%c0_12, %c0_13] : memref<128x128xbf16, #tpu.memory_space<vmem>>, vector<128x128xbf16>
    %c0_14 = arith.constant 0 : index
    %c0_15 = arith.constant 0 : index
    %18 = vector.load %arg7[%c0_14, %c0_15] : memref<1x128xf32, #tpu.memory_space<vmem>>, vector<1x128xf32>
    %cst_16 = arith.constant dense<0.000000e+00> : vector<16x128xf32>
    %19 = tpu.matmul %16, %17, %cst_16 {dimension_numbers = #tpu.dot_dimension_numbers<[1], [0], [0], [1], [0, 0, 1, 1], [], []>} : vector<16x128xbf16>, vector<128x128xbf16>, vector<16x128xf32> -> vector<16x128xf32>
    %20 = vector.broadcast %18 : vector<1x128xf32> to vector<16x128xf32>
    %21 = arith.addf %19, %20 : vector<16x128xf32>
    %cst_17 = arith.constant dense<0xFF800000> : vector<16xf32>
    %22 = vector.multi_reduction <maximumf>, %21, %cst_17 [1] : vector<16x128xf32> to vector<16xf32>
    %23 = vector.shape_cast %22 : vector<16xf32> to vector<16x1xf32>
    %24 = vector.broadcast %23 : vector<16x1xf32> to vector<16x128xf32>
    %25 = arith.subf %21, %24 : vector<16x128xf32>
    %26 = math.exp %25 : vector<16x128xf32>
    %cst_18 = arith.constant dense<0.000000e+00> : vector<16xf32>
    %27 = vector.multi_reduction <add>, %26, %cst_18 [1] : vector<16x128xf32> to vector<16xf32>
    %28 = vector.shape_cast %27 : vector<16xf32> to vector<16x1xf32>
    %29 = math.log %28 : vector<16x1xf32>
    %30 = vector.broadcast %29 : vector<16x1xf32> to vector<16x128xf32>
    %31 = arith.subf %25, %30 : vector<16x128xf32>
    %c0_19 = arith.constant 0 : index
    %c0_20 = arith.constant 0 : index
    %32 = vector.load %arg8[%c0_19, %c0_20] : memref<16x128xf32, #tpu.memory_space<vmem>>, vector<16x128xf32>
    tpu.vector_store %arg8[%c0_19, %c0_20], %31 {strides = array<i32>} : memref<16x128xf32, #tpu.memory_space<vmem>>, vector<16x128xf32>,
    return
  }
  func.func @transform_0(%arg0: i32) -> (i32, i32) {
    %c0_i32 = arith.constant 0 : i32
    %c0_i32_0 = arith.constant 0 : i32
    return %arg0, %c0_i32 : i32, i32
  }
  func.func @transform_1(%arg0: i32) -> (i32, i32) {
    %c0_i32 = arith.constant 0 : i32
    %c0_i32_0 = arith.constant 0 : i32
    %c0_i32_1 = arith.constant 0 : i32
    return %c0_i32, %c0_i32_0 : i32, i32
  }
  func.func @transform_2(%arg0: i32) -> (i32, i32) {
    %c0_i32 = arith.constant 0 : i32
    %c0_i32_0 = arith.constant 0 : i32
    %c0_i32_1 = arith.constant 0 : i32
    return %c0_i32, %c0_i32_0 : i32, i32
  }
  func.func @transform_3(%arg0: i32) -> (i32, i32) {
    %c0_i32 = arith.constant 0 : i32
    %c0_i32_0 = arith.constant 0 : i32
    %c0_i32_1 = arith.constant 0 : i32
    return %c0_i32, %c0_i32_0 : i32, i32
  }
  func.func @transform_4(%arg0: i32) -> (i32, i32) {
    %c0_i32 = arith.constant 0 : i32
    %c0_i32_0 = arith.constant 0 : i32
    %c0_i32_1 = arith.constant 0 : i32
    return %c0_i32, %c0_i32_0 : i32, i32
  }
  func.func @transform_5(%arg0: i32) -> (i32, i32) {
    %c0_i32 = arith.constant 0 : i32
    %c0_i32_0 = arith.constant 0 : i32
    %c0_i32_1 = arith.constant 0 : i32
    return %c0_i32, %c0_i32_0 : i32, i32
  }
  func.func @transform_6(%arg0: i32) -> (i32, i32) {
    %c0_i32 = arith.constant 0 : i32
    %c0_i32_0 = arith.constant 0 : i32
    %c0_i32_1 = arith.constant 0 : i32
    return %c0_i32, %c0_i32_0 : i32, i32
  }
  func.func @transform_7(%arg0: i32) -> (i32, i32) {
    %c0_i32 = arith.constant 0 : i32
    %c0_i32_0 = arith.constant 0 : i32
    return %arg0, %c0_i32 : i32, i32
  }
}

</mosaic_0001>

<llo_original>
// kernel: my_awesome_model_forward.1
$region0: #{my_awesome_model_forward.1}
  #allocation0 [shape = 'u32[]', space=smem, size = 0x4, offset = 0x4, fixed_abs, tag = 'smem constant byte address 0x4 - core index']
  #allocation1 [shape = 'u32[144,128]{1,0:T(1,128)}', space=vmem, size = 0x12000, scoped, tag = 'internal scratch']
  %s0 = inlined_call_operand.vmem [shape: bf16[32,32], index: 0, kind: input, shape index: {}]
  %s1 = inlined_call_operand.hbm [shape: bf16[32,128], index: 1, kind: input, shape index: {}]
  %s2 = inlined_call_operand.vmem [shape: f32[1,128], index: 2, kind: input, shape index: {}]
  %s3 = inlined_call_operand.vmem [shape: bf16[128,128], index: 3, kind: input, shape index: {}]
  %s4 = inlined_call_operand.vmem [shape: f32[1,128], index: 4, kind: input, shape index: {}]
  %s5 = inlined_call_operand.hbm [shape: bf16[128,128], index: 5, kind: input, shape index: {}]
  %s6 = inlined_call_operand.vmem [shape: f32[1,128], index: 6, kind: input, shape index: {}]
  %s7 = inlined_call_operand.vmem [shape: f32[32,128], index: 7, kind: output, shape index: {}]
  %s8 = sld [smem:[#allocation0]]
  $region69: #{my_awesome_model_forward.1} parent=0
    _
  %s10 = ssub.s32 1, %s8
  %s11 = scalar_select 0, %s10, %s8
  $region1: #{my_awesome_model_forward.1} parent=0
    #allocation2 [shape = 'u8[8192]{0}', space=vmem, size = 0x2000, scoped, tag = 'input window, operand 1, single buffered']
    #allocation3 [shape = 's32[2]{0}', space=sflag, size = 0x8, scoped, tag = 'scoped memory for my_awesome_model_forward.1']
    #allocation4 [shape = 'u8[32768]{0}', space=vmem, size = 0x8000, scoped, tag = 'input window, operand 5, single buffered']
    #allocation5 [shape = 's32[1]{0}', space=sflag, size = 0x4, scoped, tag = 'scoped memory for my_awesome_model_forward.1']
    %12 = vsyncpa [#allocation3], 0
    %13 = vsyncpa [#allocation5], 0
    loop: start=0, step=1, limit=4
    $region2: #{my_awesome_model_forward.1} parent=1 // loop_pre_header
      _
    $region3: #{my_awesome_model_forward.1} parent=1 // loop_header
      %s15 = sphi 0, %s19
      %p16 = scmp.ge.s32.totalorder %s15, 4
      %s25 = sphi 0, %s27
      %s28 = sphi 0, %s25
      %s29 = sphi 0, %s28
      %s45 = sphi 0, %s29
      %s49 = sphi 0, %s49
      %s51 = sphi 0, %s49
      %s52 = sphi 0, %s51
      %s66 = sphi 0, %s52
      %s70 = sphi 0, %s70
      %s72 = sphi 0, %s70
      %s73 = sphi 0, %s72
      %s87 = sphi 0, %s73
      %s91 = sphi 0, %s91
      %s93 = sphi 0, %s91
      %s94 = sphi 0, %s93
      %s108 = sphi 0, %s94
      %s112 = sphi 0, %s112
      %s114 = sphi 0, %s112
      %s115 = sphi 0, %s114
      %s129 = sphi 0, %s115
      %s133 = sphi 0, %s133
      %s135 = sphi 0, %s133
      %s136 = sphi 0, %s135
      %s150 = sphi 0, %s136
      %s154 = sphi 0, %s154
      %s156 = sphi 0, %s154
      %s157 = sphi 0, %s156
      %s171 = sphi 0, %s157
      %s177 = sphi 0, %s179
      %s180 = sphi 0, %s177
      %s181 = sphi 0, %s180
      %s197 = sphi 0, %s181
    $region4: #{my_awesome_model_forward.1} parent=1 // loop_header_branch
      %18 = sbr.rel (%p16) target = $region8
    $region5: #{my_awesome_model_forward.1} parent=1 // loop_body
      %s20 = ssub.s32 %s15, 1
      %s21 = ssub.s32 %s15, 2
      %s22 = sadd.s32 %s15, 1
      %s23 = ssub.s32 %s15, %s22
      %p24 = scmp.eq.s32.totalorder %s23, 0
      %s26 = sadd.s32 %s25, 1
      %s27 = scalar_select %p24, %s25, %s26
      %p30 = pneg %p24
      %p31 = scmp.eq.s32.totalorder %s15, 1
      %p32 = por %p30, %p31
      %p33 = scmp.ne.s32.totalorder %s25, %s28
      %p34 = scmp.eq.s32.totalorder %s15, 0
      %p35 = por %p33, %p34
      %p36 = scmp.ne.s32.totalorder %s25, %s28
      %p37 = scmp.eq.s32.totalorder %s20, 1
      %p38 = por %p36, %p37
      %p39 = scmp.ne.s32.totalorder %s28, %s29
      %p40 = scmp.eq.s32.totalorder %s20, 0
      %p41 = por %p39, %p40
      %p42 = scmp.ne.s32.totalorder %s28, %s29
      %p43 = scmp.eq.s32.totalorder %s21, 1
      %p44 = por %p42, %p43
      %p46 = scmp.ne.s32.totalorder %s29, %s45
      %p47 = scmp.eq.s32.totalorder %s21, 0
      %p48 = por %p46, %p47
      %s50 = sadd.s32 %s49, 1
      %p53 = scmp.eq.s32.totalorder %s15, 1
      %p54 = scmp.ne.s32.totalorder %s49, %s51
      %p55 = scmp.eq.s32.totalorder %s15, 0
      %p56 = por %p54, %p55
      %p57 = scmp.ne.s32.totalorder %s49, %s51
      %p58 = scmp.eq.s32.totalorder %s20, 1
      %p59 = por %p57, %p58
      %p60 = scmp.ne.s32.totalorder %s51, %s52
      %p61 = scmp.eq.s32.totalorder %s20, 0
      %p62 = por %p60, %p61
      %p63 = scmp.ne.s32.totalorder %s51, %s52
      %p64 = scmp.eq.s32.totalorder %s21, 1
      %p65 = por %p63, %p64
      %p67 = scmp.ne.s32.totalorder %s52, %s66
      %p68 = scmp.eq.s32.totalorder %s21, 0
      %p69 = por %p67, %p68
      %s71 = sadd.s32 %s70, 1
      %p74 = scmp.eq.s32.totalorder %s15, 1
      %p75 = scmp.ne.s32.totalorder %s70, %s72
      %p76 = scmp.eq.s32.totalorder %s15, 0
      %p77 = por %p75, %p76
      %p78 = scmp.ne.s32.totalorder %s70, %s72
      %p79 = scmp.eq.s32.totalorder %s20, 1
      %p80 = por %p78, %p79
      %p81 = scmp.ne.s32.totalorder %s72, %s73
      %p82 = scmp.eq.s32.totalorder %s20, 0
      %p83 = por %p81, %p82
      %p84 = scmp.ne.s32.totalorder %s72, %s73
      %p85 = scmp.eq.s32.totalorder %s21, 1
      %p86 = por %p84, %p85
      %p88 = scmp.ne.s32.totalorder %s73, %s87
      %p89 = scmp.eq.s32.totalorder %s21, 0
      %p90 = por %p88, %p89
      %s92 = sadd.s32 %s91, 1
      %p95 = scmp.eq.s32.totalorder %s15, 1
      %p96 = scmp.ne.s32.totalorder %s91, %s93
      %p97 = scmp.eq.s32.totalorder %s15, 0
      %p98 = por %p96, %p97
      %p99 = scmp.ne.s32.totalorder %s91, %s93
      %p100 = scmp.eq.s32.totalorder %s20, 1
      %p101 = por %p99, %p100
      %p102 = scmp.ne.s32.totalorder %s93, %s94
      %p103 = scmp.eq.s32.totalorder %s20, 0
      %p104 = por %p102, %p103
      %p105 = scmp.ne.s32.totalorder %s93, %s94
      %p106 = scmp.eq.s32.totalorder %s21, 1
      %p107 = por %p105, %p106
      %p109 = scmp.ne.s32.totalorder %s94, %s108
      %p110 = scmp.eq.s32.totalorder %s21, 0
      %p111 = por %p109, %p110
      %s113 = sadd.s32 %s112, 1
      %p116 = scmp.eq.s32.totalorder %s15, 1
      %p117 = scmp.ne.s32.totalorder %s112, %s114
      %p118 = scmp.eq.s32.totalorder %s15, 0
      %p119 = por %p117, %p118
      %p120 = scmp.ne.s32.totalorder %s112, %s114
      %p121 = scmp.eq.s32.totalorder %s20, 1
      %p122 = por %p120, %p121
      %p123 = scmp.ne.s32.totalorder %s114, %s115
      %p124 = scmp.eq.s32.totalorder %s20, 0
      %p125 = por %p123, %p124
      %p126 = scmp.ne.s32.totalorder %s114, %s115
      %p127 = scmp.eq.s32.totalorder %s21, 1
      %p128 = por %p126, %p127
      %p130 = scmp.ne.s32.totalorder %s115, %s129
      %p131 = scmp.eq.s32.totalorder %s21, 0
      %p132 = por %p130, %p131
      %s134 = sadd.s32 %s133, 1
      %p137 = scmp.eq.s32.totalorder %s15, 1
      %p138 = scmp.ne.s32.totalorder %s133, %s135
      %p139 = scmp.eq.s32.totalorder %s15, 0
      %p140 = por %p138, %p139
      %p141 = scmp.ne.s32.totalorder %s133, %s135
      %p142 = scmp.eq.s32.totalorder %s20, 1
      %p143 = por %p141, %p142
      %p144 = scmp.ne.s32.totalorder %s135, %s136
      %p145 = scmp.eq.s32.totalorder %s20, 0
      %p146 = por %p144, %p145
      %p147 = scmp.ne.s32.totalorder %s135, %s136
      %p148 = scmp.eq.s32.totalorder %s21, 1
      %p149 = por %p147, %p148
      %p151 = scmp.ne.s32.totalorder %s136, %s150
      %p152 = scmp.eq.s32.totalorder %s21, 0
      %p153 = por %p151, %p152
      %s155 = sadd.s32 %s154, 1
      %p158 = scmp.eq.s32.totalorder %s15, 1
      %p159 = scmp.ne.s32.totalorder %s154, %s156
      %p160 = scmp.eq.s32.totalorder %s15, 0
      %p161 = por %p159, %p160
      %p162 = scmp.ne.s32.totalorder %s154, %s156
      %p163 = scmp.eq.s32.totalorder %s20, 1
      %p164 = por %p162, %p163
      %p165 = scmp.ne.s32.totalorder %s156, %s157
      %p166 = scmp.eq.s32.totalorder %s20, 0
      %p167 = por %p165, %p166
      %p168 = scmp.ne.s32.totalorder %s156, %s157
      %p169 = scmp.eq.s32.totalorder %s21, 1
      %p170 = por %p168, %p169
      %p172 = scmp.ne.s32.totalorder %s157, %s171
      %p173 = scmp.eq.s32.totalorder %s21, 0
      %p174 = por %p172, %p173
      %s175 = ssub.s32 %s15, %s22
      %p176 = scmp.eq.s32.totalorder %s175, 0
      %s178 = sadd.s32 %s177, 1
      %s179 = scalar_select %p176, %s177, %s178
      %p182 = pneg %p176
      %p183 = scmp.eq.s32.totalorder %s15, 1
      %p184 = por %p182, %p183
      %p185 = scmp.ne.s32.totalorder %s177, %s180
      %p186 = scmp.eq.s32.totalorder %s15, 0
      %p187 = por %p185, %p186
      %p188 = scmp.ne.s32.totalorder %s177, %s180
      %p189 = scmp.eq.s32.totalorder %s20, 1
      %p190 = por %p188, %p189
      %p191 = scmp.ne.s32.totalorder %s180, %s181
      %p192 = scmp.eq.s32.totalorder %s20, 0
      %p193 = por %p191, %p192
      %p194 = scmp.ne.s32.totalorder %s180, %s181
      %p195 = scmp.eq.s32.totalorder %s21, 1
      %p196 = por %p194, %p195
      %p198 = scmp.ne.s32.totalorder %s181, %s197
      %p199 = scmp.eq.s32.totalorder %s21, 0
      %p200 = por %p198, %p199
      %p201 = scmp.le.s32.totalorder 1, %s15
      %p202 = scmp.lt.s32.totalorder %s15, 3
      %p203 = pnand %p201, %p202
      %p204 = pneg %p203
      // Predicated region
      $region9: #{my_awesome_model_forward.1} parent=5 // pred_check
        _
      $region10: #{my_awesome_model_forward.1} parent=5 // pred_check_branch
        %206 = sbr.rel (%p203) target = $region12
      $region11: #{my_awesome_model_forward.1} parent=5 // pred_region
        %s207 = ssub.s32 %s15, 1
        // Predicated region
        $region13: #{my_awesome_model_forward.1} parent=11 // pred_check
          %p208 = pneg %p62
        $region14: #{my_awesome_model_forward.1} parent=11 // pred_check_branch
          %210 = sbr.rel (%p208) target = $region16
        $region15: #{my_awesome_model_forward.1} parent=11 // pred_region
          %s212 = ssub.s32 256, 256
          %213 = vsyncadd [#allocation3], %s212
          %s214 = sshll.u32 [#allocation2], 4
          %s215 = int_to_ptr.vmem [resolvable:$true] %s214
          %220 = dma.hbm_to_vmem [thread:$0]  %s1, 256, %s215, [#allocation3], 64, 64, 4
        $region16: #{my_awesome_model_forward.1} parent=11 // pred_fallthru
          _
        // Predicated region
        $region17: #{my_awesome_model_forward.1} parent=11 // pred_check
          %p221 = pneg %p83
        $region18: #{my_awesome_model_forward.1} parent=11 // pred_check_branch
          %223 = sbr.rel (%p221) target = $region20
        $region19: #{my_awesome_model_forward.1} parent=11 // pred_region
          _
        $region20: #{my_awesome_model_forward.1} parent=11 // pred_fallthru
          _
        // Predicated region
        $region21: #{my_awesome_model_forward.1} parent=11 // pred_check
          %p224 = pneg %p104
        $region22: #{my_awesome_model_forward.1} parent=11 // pred_check_branch
          %226 = sbr.rel (%p224) target = $region24
        $region23: #{my_awesome_model_forward.1} parent=11 // pred_region
          _
        $region24: #{my_awesome_model_forward.1} parent=11 // pred_fallthru
          _
        // Predicated region
        $region25: #{my_awesome_model_forward.1} parent=11 // pred_check
          %p227 = pneg %p125
        $region26: #{my_awesome_model_forward.1} parent=11 // pred_check_branch
          %229 = sbr.rel (%p227) target = $region28
        $region27: #{my_awesome_model_forward.1} parent=11 // pred_region
          _
        $region28: #{my_awesome_model_forward.1} parent=11 // pred_fallthru
          _
        // Predicated region
        $region29: #{my_awesome_model_forward.1} parent=11 // pred_check
          %p230 = pneg %p146
        $region30: #{my_awesome_model_forward.1} parent=11 // pred_check_branch
          %232 = sbr.rel (%p230) target = $region32
        $region31: #{my_awesome_model_forward.1} parent=11 // pred_region
          %s234 = ssub.s32 1024, 1024
          %235 = vsyncadd [#allocation5], %s234
          %s236 = sshll.u32 [#allocation4], 4
          %s237 = int_to_ptr.vmem [resolvable:$true] %s236
          %242 = dma.hbm_to_vmem [thread:$0]  %s5, 1024, %s237, [#allocation5], 64, 64, 4
        $region32: #{my_awesome_model_forward.1} parent=11 // pred_fallthru
          _
        // Predicated region
        $region33: #{my_awesome_model_forward.1} parent=11 // pred_check
          %p243 = pneg %p167
        $region34: #{my_awesome_model_forward.1} parent=11 // pred_check_branch
          %245 = sbr.rel (%p243) target = $region36
        $region35: #{my_awesome_model_forward.1} parent=11 // pred_region
          _
        $region36: #{my_awesome_model_forward.1} parent=11 // pred_fallthru
          _
      $region12: #{my_awesome_model_forward.1} parent=5 // pred_fallthru
        _
      %p246 = scmp.lt.s32.totalorder %s15, 2
      // Predicated region
      $region37: #{my_awesome_model_forward.1} parent=5 // pred_check
        %p247 = pneg %p246
      $region38: #{my_awesome_model_forward.1} parent=5 // pred_check_branch
        %249 = sbr.rel (%p247) target = $region40
      $region39: #{my_awesome_model_forward.1} parent=5 // pred_region
        // Predicated region
        $region41: #{my_awesome_model_forward.1} parent=39 // pred_check
          %p250 = pneg %p35
        $region42: #{my_awesome_model_forward.1} parent=39 // pred_check_branch
          %252 = sbr.rel (%p250) target = $region44
        $region43: #{my_awesome_model_forward.1} parent=39 // pred_region
          %s253 = smul.u32 2, %s15
          %p254 = scmp.lt.s32.totalorder %s253, 3
          %s255 = scalar_select %p254, %s253, 3
          %s256 = smul.addr %s255, 4
          %s257 = scalar_lea.vmem %s0, %s256
          %s258 = smul.u32 2, %s15
        $region44: #{my_awesome_model_forward.1} parent=39 // pred_fallthru
          _
      $region40: #{my_awesome_model_forward.1} parent=5 // pred_fallthru
        _
      %p259 = scmp.le.s32.totalorder 1, %s15
      %p260 = scmp.lt.s32.totalorder %s15, 3
      %p261 = pnand %p259, %p260
      %p262 = pneg %p261
      // Predicated region
      $region45: #{my_awesome_model_forward.1} parent=5 // pred_check
        _
      $region46: #{my_awesome_model_forward.1} parent=5 // pred_check_branch
        %264 = sbr.rel (%p261) target = $region48
      $region47: #{my_awesome_model_forward.1} parent=5 // pred_region
        %s265 = ssub.s32 %s15, 1
        // Predicated region
        $region49: #{my_awesome_model_forward.1} parent=47 // pred_check
          %p266 = pneg %p62
        $region50: #{my_awesome_model_forward.1} parent=47 // pred_check_branch
          %268 = sbr.rel (%p266) target = $region52
        $region51: #{my_awesome_model_forward.1} parent=47 // pred_region
          %269 = dma.done [#allocation3], 256
        $region52: #{my_awesome_model_forward.1} parent=47 // pred_fallthru
          _
        // Predicated region
        $region53: #{my_awesome_model_forward.1} parent=47 // pred_check
          %p270 = pneg %p146
        $region54: #{my_awesome_model_forward.1} parent=47 // pred_check_branch
          %272 = sbr.rel (%p270) target = $region56
        $region55: #{my_awesome_model_forward.1} parent=47 // pred_region
          %273 = dma.done [#allocation5], 1024
        $region56: #{my_awesome_model_forward.1} parent=47 // pred_fallthru
          _
        %s274 = smul.u32 2, %s20
        %p275 = scmp.lt.s32.totalorder %s274, 3
        %s276 = scalar_select %p275, %s274, 3
        %s277 = smul.addr %s276, 4
        %s278 = scalar_lea.vmem %s0, %s277
        %p279 = pneg %p41
        %p280 = pneg %p38
        %p281 = pneg %p62
        %p282 = pneg %p59
        %p283 = pneg %p83
        %p284 = pneg %p80
        %p285 = pneg %p104
        %p286 = pneg %p101
        %p287 = pneg %p125
        %p288 = pneg %p122
        %p289 = pneg %p146
        %p290 = pneg %p143
        %p291 = pneg %p167
        %p292 = pneg %p164
        %p293 = pneg %p193
        %p294 = pneg %p190
        %s295 = smul.u32 2, %s20
        %p296 = scmp.lt.s32.totalorder %s295, 3
        %s297 = scalar_select %p296, %s295, 3
        %s298 = smul.addr %s297, 8
        %s299 = scalar_lea.vmem %s7, %s298
        %s300 = smul.u32 2, %s20
        %p301 = scmp.lt.s32.totalorder %s300, 3
        %s302 = scalar_select %p301, %s300, 3
        %s303 = smul.addr %s302, 4
        %s304 = scalar_lea.vmem %s0, %s303
        %s305 = smul.u32 2, %s20
        %s306 = smul.u32 2, %s20
        %p307 = scmp.lt.s32.totalorder %s306, 3
        %s308 = scalar_select %p307, %s306, 3
        %s309 = smul.addr %s308, 8
        %s310 = scalar_lea.vmem %s7, %s309
        %s311 = smul.u32 2, %s20
        %v313 = vld [vmem:[%s304] sm:$0xf]
        %v314 = vld [vmem:[%s304 + $0x4] sm:$0xf]
        %v315 = vld [vmem:[#allocation2] sm:$0xf]
        %v316 = vld [vmem:[#allocation2 + $0x4] sm:$0xf]
        %v317 = vld [vmem:[#allocation2 + $0x8] sm:$0xf]
        %v318 = vld [vmem:[#allocation2 + $0xc] sm:$0xf]
        %v319 = vld [vmem:[%s2] sm:$0x1]
        %v321 = vlaneseq
        %v322 = vshrl.u32 %v321, 7
        %v323 = vsub.s32 0, %v322
        %v324 = vrot.slane %v319, %v323
        %v328 = vunpack.c.l.b16 %v313
        %v329 = vunpack.c.l.b16 %v314
        %v330 = vpack.c.b16 %v329, %v328
        %v335 = vunpack.c.l.b16 %v315
        %v336 = vunpack.c.l.b16 %v316
        %v337 = vunpack.c.l.b16 %v317
        %v338 = vunpack.c.l.b16 %v318
        %v339 = vpack.c.b16 %v336, %v335
        %v340 = vpack.c.b16 %v338, %v337
        %vm343 = vcmask 261120
        %v345 = vsel %vm343, %v330, 0
        %347 = vmatprep.subr.bf16.mxu0 0
        %348 = vmatpush1.bf16.msra.mxu0 %v339
        %349 = vmatprep.subr.bf16.mxu0 0
        %350 = vmatpush1.bf16.msra.mxu0 %v340
        %351 = vmatprep.subr.bf16.mxu0 0
        %352 = vmatpush1.bf16.msra.mxu0 0
        %353 = vmatprep.subr.bf16.mxu0 0
        %354 = vmatpush1.bf16.msra.mxu0 0
        %355 = vmatprep.subr.bf16.mxu0 0
        %356 = vmatpush1.bf16.msra.mxu0 0
        %357 = vmatprep.subr.bf16.mxu0 0
        %358 = vmatpush1.bf16.msra.mxu0 0
        %359 = vmatprep.subr.bf16.mxu0 0
        %360 = vmatpush1.bf16.msra.mxu0 0
        %361 = vmatprep.subr.bf16.mxu0 0
        %362 = vmatpush1.bf16.msra.mxu0 0
        %363 = vmatprep.subr.bf16.mxu0 0
        %364 = vmatpush1.bf16.msra.mxu0 0
        %365 = vmatprep.subr.bf16.mxu0 0
        %366 = vmatpush1.bf16.msra.mxu0 0
        %367 = vmatprep.subr.bf16.mxu0 0
        %368 = vmatpush1.bf16.msra.mxu0 0
        %369 = vmatprep.subr.bf16.mxu0 0
        %370 = vmatpush1.bf16.msra.mxu0 0
        %371 = vmatprep.subr.bf16.mxu0 0
        %372 = vmatpush1.bf16.msra.mxu0 0
        %373 = vmatprep.subr.bf16.mxu0 0
        %374 = vmatpush1.bf16.msra.mxu0 0
        %375 = vmatprep.subr.bf16.mxu0 0
        %376 = vmatpush1.bf16.msra.mxu0 0
        %377 = vmatprep.subr.bf16.mxu0 0
        %378 = vmatpush1.bf16.msra.mxu0 0
        %379 = vmatprep.mubr.bf16.mxu0 0
        %380 = vmatmul.mubr.bf16.gmra.mrb[0].mxu0 %v345
        %v381 = vpop.f32.mrb[0].mxu0
        %v382 = vadd.f32 %v324, %v381
        %v383 = vpop.f32.mrb[0].mxu0
        %v384 = vpop.f32.mrb[0].mxu0
        %v385 = vadd.f32 %v324, %v384
        %v386 = vpop.f32.mrb[0].mxu0
        %387 = vdwg.mxu0
        %v388 = vmax.f32 %v382, 0.0
        %v389 = vmax.f32 %v385, 0.0
        %v390 = vpack.c.bf16 %v389, %v388
        %v391 = vld [vmem:[%s3] sm:$0xf]
        %v392 = vld [vmem:[%s3 + $0x4] sm:$0xf]
        %v393 = vld [vmem:[%s3 + $0x8] sm:$0xf]
        %v394 = vld [vmem:[%s3 + $0xc] sm:$0xf]
        %v395 = vld [vmem:[%s3 + $0x10] sm:$0xf]
        %v396 = vld [vmem:[%s3 + $0x14] sm:$0xf]
        %v397 = vld [vmem:[%s3 + $0x18] sm:$0xf]
        %v398 = vld [vmem:[%s3 + $0x1c] sm:$0xf]
        %v399 = vld [vmem:[%s3 + $0x20] sm:$0xf]
        %v400 = vld [vmem:[%s3 + $0x24] sm:$0xf]
        %v401 = vld [vmem:[%s3 + $0x28] sm:$0xf]
        %v402 = vld [vmem:[%s3 + $0x2c] sm:$0xf]
        %v403 = vld [vmem:[%s3 + $0x30] sm:$0xf]
        %v404 = vld [vmem:[%s3 + $0x34] sm:$0xf]
        %v405 = vld [vmem:[%s3 + $0x38] sm:$0xf]
        %v406 = vld [vmem:[%s3 + $0x3c] sm:$0xf]
        %v407 = vld [vmem:[%s4] sm:$0x1]
        %v409 = vlaneseq
        %v410 = vshrl.u32 %v409, 7
        %v411 = vsub.s32 0, %v410
        %v412 = vrot.slane %v407, %v411
        %v430 = vunpack.c.l.b16 %v391
        %v431 = vunpack.c.l.b16 %v392
        %v432 = vunpack.c.l.b16 %v393
        %v433 = vunpack.c.l.b16 %v394
        %v434 = vunpack.c.l.b16 %v395
        %v435 = vunpack.c.l.b16 %v396
        %v436 = vunpack.c.l.b16 %v397
        %v437 = vunpack.c.l.b16 %v398
        %v438 = vunpack.c.l.b16 %v399
        %v439 = vunpack.c.l.b16 %v400
        %v440 = vunpack.c.l.b16 %v401
        %v441 = vunpack.c.l.b16 %v402
        %v442 = vunpack.c.l.b16 %v403
        %v443 = vunpack.c.l.b16 %v404
        %v444 = vunpack.c.l.b16 %v405
        %v445 = vunpack.c.l.b16 %v406
        %v446 = vpack.c.b16 %v431, %v430
        %v447 = vpack.c.b16 %v433, %v432
        %v448 = vpack.c.b16 %v435, %v434
        %v449 = vpack.c.b16 %v437, %v436
        %v450 = vpack.c.b16 %v439, %v438
        %v451 = vpack.c.b16 %v441, %v440
        %v452 = vpack.c.b16 %v443, %v442
        %v453 = vpack.c.b16 %v445, %v444
        %462 = vmatprep.subr.bf16.mxu0 0
        %463 = vmatpush1.bf16.msra.mxu0 %v446
        %464 = vmatprep.subr.bf16.mxu0 0
        %465 = vmatpush1.bf16.msra.mxu0 %v447
        %466 = vmatprep.subr.bf16.mxu0 0
        %467 = vmatpush1.bf16.msra.mxu0 %v448
        %468 = vmatprep.subr.bf16.mxu0 0
        %469 = vmatpush1.bf16.msra.mxu0 %v449
        %470 = vmatprep.subr.bf16.mxu0 0
        %471 = vmatpush1.bf16.msra.mxu0 %v450
        %472 = vmatprep.subr.bf16.mxu0 0
        %473 = vmatpush1.bf16.msra.mxu0 %v451
        %474 = vmatprep.subr.bf16.mxu0 0
        %475 = vmatpush1.bf16.msra.mxu0 %v452
        %476 = vmatprep.subr.bf16.mxu0 0
        %477 = vmatpush1.bf16.msra.mxu0 %v453
        %478 = vmatprep.subr.bf16.mxu0 0
        %479 = vmatpush1.bf16.msra.mxu0 0
        %480 = vmatprep.subr.bf16.mxu0 0
        %481 = vmatpush1.bf16.msra.mxu0 0
        %482 = vmatprep.subr.bf16.mxu0 0
        %483 = vmatpush1.bf16.msra.mxu0 0
        %484 = vmatprep.subr.bf16.mxu0 0
        %485 = vmatpush1.bf16.msra.mxu0 0
        %486 = vmatprep.subr.bf16.mxu0 0
        %487 = vmatpush1.bf16.msra.mxu0 0
        %488 = vmatprep.subr.bf16.mxu0 0
        %489 = vmatpush1.bf16.msra.mxu0 0
        %490 = vmatprep.subr.bf16.mxu0 0
        %491 = vmatpush1.bf16.msra.mxu0 0
        %492 = vmatprep.subr.bf16.mxu0 0
        %493 = vmatpush1.bf16.msra.mxu0 0
        %494 = vmatprep.mubr.bf16.mxu0 0
        %495 = vmatmul.mubr.bf16.gmra.mrb[0].mxu0 %v390
        %v496 = vpop.f32.mrb[0].mxu0
        %v497 = vadd.f32 %v412, %v496
        %v498 = vpop.f32.mrb[0].mxu0
        %v499 = vpop.f32.mrb[0].mxu0
        %v500 = vadd.f32 %v412, %v499
        %v501 = vpop.f32.mrb[0].mxu0
        %502 = vdwg.mxu0
        %v503 = vmax.f32 %v497, 0.0
        %v504 = vmax.f32 %v500, 0.0
        %v505 = vpack.c.bf16 %v504, %v503
        %v506 = vld [vmem:[#allocation4] sm:$0xf]
        %v507 = vld [vmem:[#allocation4 + $0x4] sm:$0xf]
        %v508 = vld [vmem:[#allocation4 + $0x8] sm:$0xf]
        %v509 = vld [vmem:[#allocation4 + $0xc] sm:$0xf]
        %v510 = vld [vmem:[#allocation4 + $0x10] sm:$0xf]
        %v511 = vld [vmem:[#allocation4 + $0x14] sm:$0xf]
        %v512 = vld [vmem:[#allocation4 + $0x18] sm:$0xf]
        %v513 = vld [vmem:[#allocation4 + $0x1c] sm:$0xf]
        %v514 = vld [vmem:[#allocation4 + $0x20] sm:$0xf]
        %v515 = vld [vmem:[#allocation4 + $0x24] sm:$0xf]
        %v516 = vld [vmem:[#allocation4 + $0x28] sm:$0xf]
        %v517 = vld [vmem:[#allocation4 + $0x2c] sm:$0xf]
        %v518 = vld [vmem:[#allocation4 + $0x30] sm:$0xf]
        %v519 = vld [vmem:[#allocation4 + $0x34] sm:$0xf]
        %v520 = vld [vmem:[#allocation4 + $0x38] sm:$0xf]
        %v521 = vld [vmem:[#allocation4 + $0x3c] sm:$0xf]
        %v522 = vld [vmem:[%s6] sm:$0x1]
        %v524 = vlaneseq
        %v525 = vshrl.u32 %v524, 7
        %v526 = vsub.s32 0, %v525
        %v527 = vrot.slane %v522, %v526
        %v545 = vunpack.c.l.b16 %v506
        %v546 = vunpack.c.l.b16 %v507
        %v547 = vunpack.c.l.b16 %v508
        %v548 = vunpack.c.l.b16 %v509
        %v549 = vunpack.c.l.b16 %v510
        %v550 = vunpack.c.l.b16 %v511
        %v551 = vunpack.c.l.b16 %v512
        %v552 = vunpack.c.l.b16 %v513
        %v553 = vunpack.c.l.b16 %v514
        %v554 = vunpack.c.l.b16 %v515
        %v555 = vunpack.c.l.b16 %v516
        %v556 = vunpack.c.l.b16 %v517
        %v557 = vunpack.c.l.b16 %v518
        %v558 = vunpack.c.l.b16 %v519
        %v559 = vunpack.c.l.b16 %v520
        %v560 = vunpack.c.l.b16 %v521
        %v561 = vpack.c.b16 %v546, %v545
        %v562 = vpack.c.b16 %v548, %v547
        %v563 = vpack.c.b16 %v550, %v549
        %v564 = vpack.c.b16 %v552, %v551
        %v565 = vpack.c.b16 %v554, %v553
        %v566 = vpack.c.b16 %v556, %v555
        %v567 = vpack.c.b16 %v558, %v557
        %v568 = vpack.c.b16 %v560, %v559
        %577 = vmatprep.subr.bf16.mxu0 0
        %578 = vmatpush1.bf16.msra.mxu0 %v561
        %579 = vmatprep.subr.bf16.mxu0 0
        %580 = vmatpush1.bf16.msra.mxu0 %v562
        %581 = vmatprep.subr.bf16.mxu0 0
        %582 = vmatpush1.bf16.msra.mxu0 %v563
        %583 = vmatprep.subr.bf16.mxu0 0
        %584 = vmatpush1.bf16.msra.mxu0 %v564
        %585 = vmatprep.subr.bf16.mxu0 0
        %586 = vmatpush1.bf16.msra.mxu0 %v565
        %587 = vmatprep.subr.bf16.mxu0 0
        %588 = vmatpush1.bf16.msra.mxu0 %v566
        %589 = vmatprep.subr.bf16.mxu0 0
        %590 = vmatpush1.bf16.msra.mxu0 %v567
        %591 = vmatprep.subr.bf16.mxu0 0
        %592 = vmatpush1.bf16.msra.mxu0 %v568
        %593 = vmatprep.subr.bf16.mxu0 0
        %594 = vmatpush1.bf16.msra.mxu0 0
        %595 = vmatprep.subr.bf16.mxu0 0
        %596 = vmatpush1.bf16.msra.mxu0 0
        %597 = vmatprep.subr.bf16.mxu0 0
        %598 = vmatpush1.bf16.msra.mxu0 0
        %599 = vmatprep.subr.bf16.mxu0 0
        %600 = vmatpush1.bf16.msra.mxu0 0
        %601 = vmatprep.subr.bf16.mxu0 0
        %602 = vmatpush1.bf16.msra.mxu0 0
        %603 = vmatprep.subr.bf16.mxu0 0
        %604 = vmatpush1.bf16.msra.mxu0 0
        %605 = vmatprep.subr.bf16.mxu0 0
        %606 = vmatpush1.bf16.msra.mxu0 0
        %607 = vmatprep.subr.bf16.mxu0 0
        %608 = vmatpush1.bf16.msra.mxu0 0
        %609 = vmatprep.mubr.bf16.mxu0 0
        %610 = vmatmul.mubr.bf16.gmra.mrb[0].mxu0 %v505
        %v611 = vpop.f32.mrb[0].mxu0
        %v612 = vadd.f32 %v527, %v611
        %v613 = vpop.f32.mrb[0].mxu0
        %v614 = vpop.f32.mrb[0].mxu0
        %v615 = vadd.f32 %v527, %v614
        %v616 = vpop.f32.mrb[0].mxu0
        %617 = vdwg.mxu0
        %618 = vmax.xlane.f32.xlu0 %v612
        %v619 = vpop.xlane.xlu0 %618
        %620 = vmax.xlane.f32.xlu0 %v615
        %v621 = vpop.xlane.xlu0 %620
        %v622 = vsub.f32 %v612, %v619
        %v623 = vsub.f32 %v615, %v621
        %v624 = vmul.f32 %v622, 1.442695
        %v625 = vpow.pop %v624
        %v626 = vmul.f32 %v623, 1.442695
        %v627 = vpow.pop %v626
        %628 = vadd.xlane.f32.xlu0 %v625
        %v629 = vpop.xlane.xlu0 %628
        %630 = vadd.xlane.f32.xlu0 %v627
        %v631 = vpop.xlane.xlu0 %630
        %v632 = vlog2.pop %v629
        %v633 = vmul.f32 %v632, 0.6931472
        %v634 = vlog2.pop %v631
        %v635 = vmul.f32 %v634, 0.6931472
        %v636 = vsub.f32 %v622, %v633
        %v637 = vsub.f32 %v623, %v635
        %638 = vst [vmem:[%s310] sm:$0xff] %v636
        %639 = vst [vmem:[%s310 + $0x8] sm:$0xff] %v637
        %s640 = smul.u32 2, %s20
        %p641 = scmp.lt.s32.totalorder %s640, 3
        %s642 = scalar_select %p641, %s640, 3
        %s643 = smul.addr %s642, 8
        %s644 = scalar_lea.vmem %s7, %s643
        // Predicated region
        $region57: #{my_awesome_model_forward.1} parent=47 // pred_check
          %p645 = pneg %p190
        $region58: #{my_awesome_model_forward.1} parent=47 // pred_check_branch
          %647 = sbr.rel (%p645) target = $region60
        $region59: #{my_awesome_model_forward.1} parent=47 // pred_region
          %s648 = smul.u32 2, %s20
        $region60: #{my_awesome_model_forward.1} parent=47 // pred_fallthru
          _
      $region48: #{my_awesome_model_forward.1} parent=5 // pred_fallthru
        _
      %p649 = scmp.le.s32.totalorder 2, %s15
      // Predicated region
      $region61: #{my_awesome_model_forward.1} parent=5 // pred_check
        %p650 = pneg %p649
      $region62: #{my_awesome_model_forward.1} parent=5 // pred_check_branch
        %652 = sbr.rel (%p650) target = $region64
      $region63: #{my_awesome_model_forward.1} parent=5 // pred_region
        %s653 = ssub.s32 %s15, 2
        // Predicated region
        $region65: #{my_awesome_model_forward.1} parent=63 // pred_check
          %p654 = pneg %p196
        $region66: #{my_awesome_model_forward.1} parent=63 // pred_check_branch
          %656 = sbr.rel (%p654) target = $region68
        $region67: #{my_awesome_model_forward.1} parent=63 // pred_region
          %s657 = smul.u32 2, %s21
          %p658 = scmp.lt.s32.totalorder %s657, 3
          %s659 = scalar_select %p658, %s657, 3
          %s660 = smul.addr %s659, 8
          %s661 = scalar_lea.vmem %s7, %s660
        $region68: #{my_awesome_model_forward.1} parent=63 // pred_fallthru
          _
      $region64: #{my_awesome_model_forward.1} parent=5 // pred_fallthru
        _
    $region6: #{my_awesome_model_forward.1} parent=1 // loop_footer
      %s19 = sadd.s32 1, %s15
    $region7: #{my_awesome_model_forward.1} parent=1 // loop_footer_branch
      %14 = sbr.rel target = $region3
    $region8: #{my_awesome_model_forward.1} parent=1 // loop_exit
      _
    %662 = vsyncpa [#allocation3], 1
    %s663 = scalar_lea.sflag [#allocation3], 1
    %664 = vsyncpa %s663, 1
    %665 = vsyncpa [#allocation5], 1

</llo_original>
